<compile_context>
chip_gen: v5e
topology: v5e:2x2
jax: 0.10.0
libtpu: 0.0.40
codegen_flags: <defaults>
</compile_context>

<pallas_src>
import jax
import jax.numpy as jnp
from jax.experimental import pallas as pl
from jax.experimental.pallas import tpu as pltpu

EPS = 1e-5


# --------------------------------------------------------------------------
# Kernels
# --------------------------------------------------------------------------
def _stream_kernel(x_ref, w1_ref, part_ref):
    """One (B, TK) x-tile: BN1 (batch stats; gamma/beta pre-folded into w1/b1)
    fused with the partial matmul into a resident (B, 64) accumulator."""
    k = pl.program_id(1)

    @pl.when(k == 0)
    def _init():
        part_ref[...] = jnp.zeros_like(part_ref)

    x = x_ref[...].astype(jnp.float32)                       # (B, TK)
    mean = jnp.mean(x, axis=0, keepdims=True)                # (1, TK)
    d = x - mean
    var = jnp.mean(d * d, axis=0, keepdims=True)             # two-pass variance
    xhat = d * jax.lax.rsqrt(var + EPS)                      # (B, TK)
    # Native bf16 x bf16 -> f32 MXU path; no VPU upcast of the weight tile.
    part_ref[...] += jnp.dot(xhat.astype(jnp.bfloat16), w1_ref[...],
                             preferred_element_type=jnp.float32)


def _epilogue_kernel(part_ref, b1_ref, g2_ref, be2_ref, w2_ref, b2_ref, out_ref):
    """Sum per-core partials, then bias + ReLU + BN2 + Linear(64, NC_pad)."""
    h = jnp.sum(part_ref[...], axis=0) + b1_ref[...]         # (B, 64)
    h = jnp.maximum(h, 0.0)                                  # ReLU
    m2 = jnp.mean(h, axis=0, keepdims=True)
    d2 = h - m2
    v2 = jnp.mean(d2 * d2, axis=0, keepdims=True)
    z = d2 * jax.lax.rsqrt(v2 + EPS) * g2_ref[...] + be2_ref[...]
    out = jnp.dot(z, w2_ref[...], preferred_element_type=jnp.float32) + b2_ref[...]
    out_ref[...] = out.astype(out_ref.dtype)                 # (B, NC_pad) lane-dense


# --------------------------------------------------------------------------
# Hardware-aware sizing helpers
# --------------------------------------------------------------------------
def _vmem_limit_bytes():
    """3/4 of physical VMEM, capped at 100 MiB: v5e/v6e (128 MiB) -> 96 MiB,
    v7x (64 MiB) -> 48 MiB.  Conservative fallback if the query fails."""
    try:
        info = pltpu.get_tpu_info()
        cap = getattr(info, "vmem_capacity_bytes", None)
        if cap:
            return int(min(cap * 3 // 4, 100 * 1024 * 1024))
    except Exception:
        pass
    return 48 * 1024 * 1024


def _detect_num_tc():
    """Best-effort TensorCore count (2 on v7x, 1 on v5e/v6e); default 1."""
    try:
        info = pltpu.get_tpu_info()
        for name in ("num_cores", "tensorcores_per_chip", "cores_per_chip"):
            v = getattr(info, name, None)
            if v:
                return int(v)
    except Exception:
        pass
    try:
        return int(getattr(jax.devices()[0], "num_cores", 1))
    except Exception:
        return 1


def _choose_tk(d_pad, batch, x_itemsize, vmem_limit, max_tk_cap=65536):
    """Largest multiple-of-128 divisor of d_pad whose double-buffered tiles
    (x block + lane-padded bf16 w1 block) fit ~60% of the VMEM limit."""
    budget = int(vmem_limit * 0.6)
    per_col = 2 * (batch * x_itemsize + 128 * 2)   # 2x buffering; w1 64->128 lanes
    max_tk = max(128, budget // per_col)
    max_tk = min(max_tk, max_tk_cap, d_pad)
    best = 128
    c = 128
    while c <= max_tk:
        if d_pad % c == 0:
            best = c
        c += 128
    return best


# --------------------------------------------------------------------------
# Parameter preparation (offline folding)
# --------------------------------------------------------------------------
def init_params(key, D, num_class):
    """PyTorch-default init (BN: gamma=1, beta=0; Linear: U(+-1/sqrt(fan_in)))."""
    k1, k2, k3, k4 = jax.random.split(key, 4)
    bound1 = 1.0 / jnp.sqrt(jnp.float32(D))
    bound2 = 1.0 / jnp.sqrt(jnp.float32(64))
    return {
        # BatchNorm1d(D)
        "gamma1": jnp.ones((1, D), jnp.float32),
        "beta1": jnp.zeros((1, D), jnp.float32),
        # Linear(D, 64) -- stored transposed (D, 64)
        "w1": jax.random.uniform(k1, (D, 64), jnp.float32, -bound1, bound1),
        "b1": jax.random.uniform(k2, (1, 64), jnp.float32, -bound1, bound1),
        # BatchNorm1d(64)
        "gamma2": jnp.ones((1, 64), jnp.float32),
        "beta2": jnp.zeros((1, 64), jnp.float32),
        # Linear(64, num_class) -- stored transposed (64, num_class)
        "w2": jax.random.uniform(k3, (64, num_class), jnp.float32, -bound2, bound2),
        "b2": jax.random.uniform(k4, (1, num_class), jnp.float32, -bound2, bound2),
    }


def fuse_params(params):
    """Fold gamma1 into w1 rows (bf16) and beta1 @ w1 into b1; pad classifier
    to a lane-dense width.  Done once, outside the kernel."""
    w1 = params["w1"].astype(jnp.float32)
    w1f = (params["gamma1"].reshape(-1, 1) * w1).astype(jnp.bfloat16)     # (D, 64)
    b1f = params["b1"].astype(jnp.float32) + params["beta1"] @ w1         # (1, 64)
    num_class = params["w2"].shape[1]
    nc_pad = ((num_class + 127) // 128) * 128
    w2p = jnp.pad(params["w2"].astype(jnp.float32),
                  ((0, 0), (0, nc_pad - num_class)))
    b2p = jnp.pad(params["b2"].astype(jnp.float32),
                  ((0, 0), (0, nc_pad - num_class)))
    return {
        "w1f": w1f, "b1f": b1f,
        "gamma2": params["gamma2"].astype(jnp.float32),
        "beta2": params["beta2"].astype(jnp.float32),
        "w2p": w2p, "b2p": b2p,
        "num_class": num_class, "nc_pad": nc_pad,
    }


# --------------------------------------------------------------------------
# Forward
# --------------------------------------------------------------------------
def simple_svm_forward(x_nchw, fused, tk=None, n_split=None):
    """x_nchw: (B, C, H, W).  Returns (B, num_class) float32."""
    B = x_nchw.shape[0]
    x_flat = x_nchw.reshape(B, -1)                           # nn.Flatten
    if B >= 64:
        # Large batch: the activation stream dominates -> stream it in bf16
        # (BN1 stats and the matmul accumulator stay f32 inside the kernel).
        x_flat = x_flat.astype(jnp.bfloat16)
    D = x_flat.shape[1]
    w1f = fused["w1f"]
    assert w1f.shape[0] == D, "param / input feature-size mismatch"

    # Zero-pad D to a lane multiple; padded columns contribute exactly 0
    # (x_hat = 0 there and the padded w1 rows are 0).
    d_pad = ((D + 127) // 128) * 128
    if d_pad != D:
        x_flat = jnp.pad(x_flat, ((0, 0), (0, d_pad - D)))
        w1f = jnp.pad(w1f, ((0, d_pad - D), (0, 0)))

    vmem_limit = _vmem_limit_bytes()
    if tk is None or d_pad % tk != 0 or tk % 128 != 0:
        tk = _choose_tk(d_pad, B, x_flat.dtype.itemsize, vmem_limit)
    grid_k = d_pad // tk

    if n_split is None:
        n_split = min(2, _detect_num_tc())
    n_split = max(1, int(n_split))
    if grid_k % n_split != 0 or grid_k < n_split:
        n_split = 1
    kpb = grid_k // n_split                                   # K-blocks per split

    num_class = fused["num_class"]
    nc_pad = fused["nc_pad"]

    flops = 2 * B * d_pad * 64
    bytes_accessed = (x_flat.size * x_flat.dtype.itemsize
                      + w1f.size * 2                          # bf16 weights
                      + n_split * B * 64 * 4)                 # partials

    # ---- streaming kernel: BN1 + partial x_hat @ W1' over the D reduction ----
    partials = pl.pallas_call(
        _stream_kernel,
        out_shape=jax.ShapeDtypeStruct((n_split, B, 64), jnp.float32),
        grid_spec=pltpu.PrefetchScalarGridSpec(
            num_scalar_prefetch=0,
            grid=(n_split, kpb),
            in_specs=[
                pl.BlockSpec((B, tk), lambda p, k: (0, p * kpb + k)),      # x tile
                pl.BlockSpec((tk, 64), lambda p, k: (p * kpb + k, 0)),     # w1' tile
            ],
            out_specs=pl.BlockSpec((None, B, 64), lambda p, k: (p, 0, 0)),  # partial acc
        ),
        compiler_params=pltpu.CompilerParams(
            dimension_semantics=("parallel", "arbitrary"),    # split-D x reduction
            vmem_limit_bytes=vmem_limit,
        ),
        cost_estimate=pl.CostEstimate(
            flops=flops, transcendentals=d_pad, bytes_accessed=bytes_accessed),
    )(x_flat, w1f)

    # ---- tiny epilogue: sum partials, bias + ReLU + BN2 + Linear(64, NC) ----
    out = pl.pallas_call(
        _epilogue_kernel,
        out_shape=jax.ShapeDtypeStruct((B, nc_pad), jnp.float32),
        grid_spec=pltpu.PrefetchScalarGridSpec(
            num_scalar_prefetch=0,
            grid=(1,),
            in_specs=[
                pl.BlockSpec((n_split, B, 64), lambda i: (0, 0, 0)),
                pl.BlockSpec((1, 64), lambda i: (0, 0)),      # b1'
                pl.BlockSpec((1, 64), lambda i: (0, 0)),      # gamma2
                pl.BlockSpec((1, 64), lambda i: (0, 0)),      # beta2
                pl.BlockSpec((64, nc_pad), lambda i: (0, 0)), # w2 (padded)
                pl.BlockSpec((1, nc_pad), lambda i: (0, 0)),  # b2 (padded)
            ],
            out_specs=pl.BlockSpec((B, nc_pad), lambda i: (0, 0)),
        ),
        compiler_params=pltpu.CompilerParams(
            dimension_semantics=("arbitrary",),
            vmem_limit_bytes=vmem_limit,
        ),
    )(partials, fused["b1f"], fused["gamma2"], fused["beta2"],
      fused["w2p"], fused["b2p"])

    return out[:, :num_class]


# --------------------------------------------------------------------------
# Pure-JAX reference (same gamma-folded, bf16-rounded w1; two-pass variance)
# --------------------------------------------------------------------------
def _reference_forward(x_nchw, params):
    eps = 1e-5
    B = x_nchw.shape[0]
    x = x_nchw.reshape(B, -1).astype(jnp.float32)
    m1 = jnp.mean(x, axis=0, keepdims=True)
    v1 = jnp.mean((x - m1) ** 2, axis=0, keepdims=True)
    xhat = (x - m1) * jax.lax.rsqrt(v1 + eps)
    w1 = params["w1"].astype(jnp.float32)
    w1f = (params["gamma1"].reshape(-1, 1) * w1).astype(jnp.bfloat16).astype(jnp.float32)
    b1f = params["b1"] + params["beta1"] @ w1
    h = jnp.dot(xhat, w1f, precision=jax.lax.Precision.HIGHEST) + b1f
    h = jnp.maximum(h, 0.0)
    m2 = jnp.mean(h, axis=0, keepdims=True)
    v2 = jnp.mean((h - m2) ** 2, axis=0, keepdims=True)
    z = (h - m2) * jax.lax.rsqrt(v2 + eps) * params["gamma2"] + params["beta2"]
    return jnp.dot(z, params["w2"], precision=jax.lax.Precision.HIGHEST) + params["b2"]


if __name__ == "__main__":
    key = jax.random.PRNGKey(0)
    kx, kp = jax.random.split(key)

    # Small shapes consistent with the forward: (B, C, H, W) -> flatten -> D.
    B, C, H, W = 2, 4, 16, 16
    D = C * H * W          # 1024 (original module hard-codes 196608 = 3*256*256)
    num_class = 10

    x = jax.random.normal(kx, (B, C, H, W), jnp.float32)
    params = init_params(kp, D, num_class)
    fused = fuse_params(params)

    # tk=256 -> 4 K-tiles; n_split=2 exercises the split-D partial-accumulator
    # path (runs serially and stays correct on single-TensorCore chips).
    out = simple_svm_forward(x, fused, tk=256, n_split=2)
    out = jax.block_until_ready(out)
    assert out.shape == (B, num_class)

    ref = jax.block_until_ready(_reference_forward(x, params))
    assert jnp.allclose(out, ref, rtol=2e-2, atol=2e-2), (
        f"max abs diff {jnp.max(jnp.abs(out - ref))}")

    print("KERNEL_OK")
</pallas_src>

<mosaic_0001>
module attributes {stable_mosaic.version = 11 : i64} {
  func.func @_stream_kernel(%arg0: i32, %arg1: i32, %arg2: memref<2x256xf32, #tpu.memory_space<vmem>>, %arg3: memref<256x64xbf16, #tpu.memory_space<vmem>>, %arg4: memref<1x2x64xf32, #tpu.memory_space<vmem>>) attributes {dimension_semantics = [#tpu.dimension_semantics<parallel>, #tpu.dimension_semantics<arbitrary>], iteration_bounds = array<i64: 2, 2>, scalar_prefetch = 0 : i64, scratch_operands = 0 : i64, tpu.core_type = #tpu.core_type<tc>, window_params = [{transform_indices = @transform_0, window_bounds = array<i64: 2, 256>}, {transform_indices = @transform_1, window_bounds = array<i64: 256, 64>}, {transform_indices = @transform_2, window_bounds = array<i64: 1, 2, 64>}]} {
    %c0_i32 = arith.constant 0 : i32
    %0 = arith.cmpi eq, %arg1, %c0_i32 : i32
    %1 = arith.extui %0 : i1 to i32
    %c0_i32_0 = arith.constant 0 : i32
    %2 = arith.cmpi ne, %1, %c0_i32_0 : i32
    scf.if %2 {
      %cst_15 = arith.constant 0.000000e+00 : f32
      %29 = vector.broadcast %cst_15 : f32 to vector<2x64xf32>
      %c0_16 = arith.constant 0 : index
      %c0_17 = arith.constant 0 : index
      %c0_18 = arith.constant 0 : index
      %30 = vector.load %arg4[%c0_16, %c0_17, %c0_18] : memref<1x2x64xf32, #tpu.memory_space<vmem>>, vector<1x2x64xf32>
      %31 = vector.shape_cast %30 : vector<1x2x64xf32> to vector<2x64xf32>
      %32 = vector.shape_cast %29 : vector<2x64xf32> to vector<1x2x64xf32>
      tpu.vector_store %arg4[%c0_16, %c0_17, %c0_18], %32 {strides = array<i32>} : memref<1x2x64xf32, #tpu.memory_space<vmem>>, vector<1x2x64xf32>,
    } else {
    }
    %c0 = arith.constant 0 : index
    %c0_1 = arith.constant 0 : index
    %3 = vector.load %arg2[%c0, %c0_1] : memref<2x256xf32, #tpu.memory_space<vmem>>, vector<2x256xf32>
    %cst = arith.constant dense<0.000000e+00> : vector<256xf32>
    %4 = vector.multi_reduction <add>, %3, %cst [0] : vector<2x256xf32> to vector<256xf32>
    %5 = vector.shape_cast %4 : vector<256xf32> to vector<1x256xf32>
    %cst_2 = arith.constant 2.000000e+00 : f32
    %6 = vector.broadcast %cst_2 : f32 to vector<1x256xf32>
    %7 = arith.divf %5, %6 : vector<1x256xf32>
    %8 = vector.broadcast %7 : vector<1x256xf32> to vector<2x256xf32>
    %9 = arith.subf %3, %8 : vector<2x256xf32>
    %10 = arith.mulf %9, %9 : vector<2x256xf32>
    %cst_3 = arith.constant dense<0.000000e+00> : vector<256xf32>
    %11 = vector.multi_reduction <add>, %10, %cst_3 [0] : vector<2x256xf32> to vector<256xf32>
    %12 = vector.shape_cast %11 : vector<256xf32> to vector<1x256xf32>
    %cst_4 = arith.constant 2.000000e+00 : f32
    %13 = vector.broadcast %cst_4 : f32 to vector<1x256xf32>
    %14 = arith.divf %12, %13 : vector<1x256xf32>
    %cst_5 = arith.constant 9.99999974E-6 : f32
    %15 = vector.broadcast %cst_5 : f32 to vector<1x256xf32>
    %16 = arith.addf %14, %15 : vector<1x256xf32>
    %17 = math.rsqrt %16 : vector<1x256xf32>
    %18 = vector.broadcast %17 : vector<1x256xf32> to vector<2x256xf32>
    %19 = arith.mulf %9, %18 : vector<2x256xf32>
    %c0_6 = arith.constant 0 : index
    %c0_7 = arith.constant 0 : index
    %c0_8 = arith.constant 0 : index
    %20 = vector.load %arg4[%c0_6, %c0_7, %c0_8] : memref<1x2x64xf32, #tpu.memory_space<vmem>>, vector<1x2x64xf32>
    %21 = vector.shape_cast %20 : vector<1x2x64xf32> to vector<2x64xf32>
    %22 = arith.truncf %19 : vector<2x256xf32> to vector<2x256xbf16>
    %c0_9 = arith.constant 0 : index
    %c0_10 = arith.constant 0 : index
    %23 = vector.load %arg3[%c0_9, %c0_10] : memref<256x64xbf16, #tpu.memory_space<vmem>>, vector<256x64xbf16>
    %cst_11 = arith.constant dense<0.000000e+00> : vector<2x64xf32>
    %24 = tpu.matmul %22, %23, %cst_11 {dimension_numbers = #tpu.dot_dimension_numbers<[1], [0], [0], [1], [0, 0, 1, 1], [], []>} : vector<2x256xbf16>, vector<256x64xbf16>, vector<2x64xf32> -> vector<2x64xf32>
    %25 = arith.addf %21, %24 : vector<2x64xf32>
    %c0_12 = arith.constant 0 : index
    %c0_13 = arith.constant 0 : index
    %c0_14 = arith.constant 0 : index
    %26 = vector.load %arg4[%c0_12, %c0_13, %c0_14] : memref<1x2x64xf32, #tpu.memory_space<vmem>>, vector<1x2x64xf32>
    %27 = vector.shape_cast %26 : vector<1x2x64xf32> to vector<2x64xf32>
    %28 = vector.shape_cast %25 : vector<2x64xf32> to vector<1x2x64xf32>
    tpu.vector_store %arg4[%c0_12, %c0_13, %c0_14], %28 {strides = array<i32>} : memref<1x2x64xf32, #tpu.memory_space<vmem>>, vector<1x2x64xf32>,
    return
  }
  func.func @transform_0(%arg0: i32, %arg1: i32) -> (i32, i32) {
    %c2_i32 = arith.constant 2 : i32
    %0 = arith.muli %arg0, %c2_i32 : i32
    %1 = arith.addi %0, %arg1 : i32
    %c0_i32 = arith.constant 0 : i32
    %c0_i32_0 = arith.constant 0 : i32
    return %c0_i32, %1 : i32, i32
  }
  func.func @transform_1(%arg0: i32, %arg1: i32) -> (i32, i32) {
    %c2_i32 = arith.constant 2 : i32
    %0 = arith.muli %arg0, %c2_i32 : i32
    %1 = arith.addi %0, %arg1 : i32
    %c0_i32 = arith.constant 0 : i32
    %c0_i32_0 = arith.constant 0 : i32
    return %1, %c0_i32 : i32, i32
  }
  func.func @transform_2(%arg0: i32, %arg1: i32) -> (i32, i32, i32) {
    %c0_i32 = arith.constant 0 : i32
    %c0_i32_0 = arith.constant 0 : i32
    %c0_i32_1 = arith.constant 0 : i32
    return %arg0, %c0_i32, %c0_i32_0 : i32, i32, i32
  }
}

</mosaic_0001>

<llo_original>
// kernel: tpu_custom_call.1
$region0: #{tpu_custom_call.1}
  #allocation0 [shape = 'u32[]', space=smem, size = 0x4, offset = 0x4, fixed_abs, tag = 'smem constant byte address 0x4 - core index']
  #allocation1 [shape = 'u32[72,128]{1,0:T(1,128)}', space=vmem, size = 0x9000, scoped, tag = 'internal scratch']
  %s0 = inlined_call_operand.vmem [shape: f32[2,1024], index: 0, kind: input, shape index: {}]
  %s1 = inlined_call_operand.vmem [shape: bf16[1024,64], index: 1, kind: input, shape index: {}]
  %s2 = inlined_call_operand.hbm [shape: f32[2,2,64], index: 2, kind: output, shape index: {}]
  %s3 = sld [smem:[#allocation0]]
  $region45: #{tpu_custom_call.1} parent=0
    _
  %s5 = ssub.s32 1, %s3
  %s6 = scalar_select 0, %s5, %s3
  $region1: #{tpu_custom_call.1} parent=0
    #allocation2 [shape = 'u8[2048]{0}', space=vmem, size = 0x800, scoped, tag = 'output window, operand 0']
    #allocation3 [shape = 's32[2]{0}', space=sflag, size = 0x8, scoped, tag = 'scoped memory for tpu_custom_call.1']
    %7 = vsyncpa [#allocation3], 0
    %s8 = scalar_lea.sflag [#allocation3], 1
    %9 = vsyncpa %s8, 0
    loop: start=0, step=1, limit=6
    $region2: #{tpu_custom_call.1} parent=1 // loop_pre_header
      _
    $region3: #{tpu_custom_call.1} parent=1 // loop_header
      %s11 = sphi 0, %s15
      %p12 = scmp.ge.s32.totalorder %s11, 6
      %s18 = sphi 0, %s30
      %s19 = sphi 0, %s26
      %s20 = sphi 0, %s18
      %s21 = sphi 0, %s19
      %s22 = sphi 0, %s20
      %s23 = sphi 0, %s21
      %s37 = sphi 0, %s39
      %s40 = sphi 0, %s37
      %s41 = sphi 0, %s40
      %s57 = sphi 0, %s41
      %s67 = sphi 0, %s69
      %s70 = sphi 0, %s67
      %s71 = sphi 0, %s70
      %s87 = sphi 0, %s71
      %s93 = sphi 0, %s95
      %s96 = sphi 0, %s93
      %s97 = sphi 0, %s96
      %s113 = sphi 0, %s97
    $region4: #{tpu_custom_call.1} parent=1 // loop_header_branch
      %14 = sbr.rel (%p12) target = $region8
    $region5: #{tpu_custom_call.1} parent=1 // loop_body
      %s16 = ssub.s32 %s11, 1
      %s17 = ssub.s32 %s11, 2
      %s24 = sadd.s32 1, %s19
      %p25 = scmp.ge.s32.totalorder %s24, 2
      %s26 = scalar_select %p25, 0, %s24
      %s27 = sadd.s32 1, %s18
      %s28 = scalar_select %p25, %s27, %s18
      %p29 = scmp.ge.s32.totalorder %s28, 2
      %s30 = scalar_select %p29, 0, %s28
      %s31 = smul.u32 %s18, 2
      %s32 = sadd.s32 %s31, %s19
      %s33 = smul.u32 %s30, 2
      %s34 = sadd.s32 %s33, %s26
      %s35 = ssub.s32 %s32, %s34
      %p36 = scmp.eq.s32.totalorder %s35, 0
      %s38 = sadd.s32 %s37, 1
      %s39 = scalar_select %p36, %s37, %s38
      %p42 = pneg %p36
      %p43 = scmp.eq.s32.totalorder %s11, 3
      %p44 = por %p42, %p43
      %p45 = scmp.ne.s32.totalorder %s37, %s40
      %p46 = scmp.eq.s32.totalorder %s11, 0
      %p47 = por %p45, %p46
      %p48 = scmp.ne.s32.totalorder %s37, %s40
      %p49 = scmp.eq.s32.totalorder %s16, 3
      %p50 = por %p48, %p49
      %p51 = scmp.ne.s32.totalorder %s40, %s41
      %p52 = scmp.eq.s32.totalorder %s16, 0
      %p53 = por %p51, %p52
      %p54 = scmp.ne.s32.totalorder %s40, %s41
      %p55 = scmp.eq.s32.totalorder %s17, 3
      %p56 = por %p54, %p55
      %p58 = scmp.ne.s32.totalorder %s41, %s57
      %p59 = scmp.eq.s32.totalorder %s17, 0
      %p60 = por %p58, %p59
      %s61 = smul.u32 %s18, 2
      %s62 = sadd.s32 %s61, %s19
      %s63 = smul.u32 %s30, 2
      %s64 = sadd.s32 %s63, %s26
      %s65 = ssub.s32 %s62, %s64
      %p66 = scmp.eq.s32.totalorder %s65, 0
      %s68 = sadd.s32 %s67, 1
      %s69 = scalar_select %p66, %s67, %s68
      %p72 = pneg %p66
      %p73 = scmp.eq.s32.totalorder %s11, 3
      %p74 = por %p72, %p73
      %p75 = scmp.ne.s32.totalorder %s67, %s70
      %p76 = scmp.eq.s32.totalorder %s11, 0
      %p77 = por %p75, %p76
      %p78 = scmp.ne.s32.totalorder %s67, %s70
      %p79 = scmp.eq.s32.totalorder %s16, 3
      %p80 = por %p78, %p79
      %p81 = scmp.ne.s32.totalorder %s70, %s71
      %p82 = scmp.eq.s32.totalorder %s16, 0
      %p83 = por %p81, %p82
      %p84 = scmp.ne.s32.totalorder %s70, %s71
      %p85 = scmp.eq.s32.totalorder %s17, 3
      %p86 = por %p84, %p85
      %p88 = scmp.ne.s32.totalorder %s71, %s87
      %p89 = scmp.eq.s32.totalorder %s17, 0
      %p90 = por %p88, %p89
      %s91 = ssub.s32 %s18, %s30
      %p92 = scmp.eq.s32.totalorder %s91, 0
      %s94 = sadd.s32 %s93, 1
      %s95 = scalar_select %p92, %s93, %s94
      %p98 = pneg %p92
      %p99 = scmp.eq.s32.totalorder %s11, 3
      %p100 = por %p98, %p99
      %p101 = scmp.ne.s32.totalorder %s93, %s96
      %p102 = scmp.eq.s32.totalorder %s11, 0
      %p103 = por %p101, %p102
      %p104 = scmp.ne.s32.totalorder %s93, %s96
      %p105 = scmp.eq.s32.totalorder %s16, 3
      %p106 = por %p104, %p105
      %p107 = scmp.ne.s32.totalorder %s96, %s97
      %p108 = scmp.eq.s32.totalorder %s16, 0
      %p109 = por %p107, %p108
      %p110 = scmp.ne.s32.totalorder %s96, %s97
      %p111 = scmp.eq.s32.totalorder %s17, 3
      %p112 = por %p110, %p111
      %p114 = scmp.ne.s32.totalorder %s97, %s113
      %p115 = scmp.eq.s32.totalorder %s17, 0
      %p116 = por %p114, %p115
      %p117 = scmp.le.s32.totalorder 1, %s11
      %p118 = scmp.lt.s32.totalorder %s11, 5
      %p119 = pnand %p117, %p118
      %p120 = pneg %p119
      // Predicated region
      $region9: #{tpu_custom_call.1} parent=5 // pred_check
        _
      $region10: #{tpu_custom_call.1} parent=5 // pred_check_branch
        %122 = sbr.rel (%p119) target = $region12
      $region11: #{tpu_custom_call.1} parent=5 // pred_region
        %s123 = ssub.s32 %s11, 1
      $region12: #{tpu_custom_call.1} parent=5 // pred_fallthru
        _
      %p124 = scmp.lt.s32.totalorder %s11, 4
      // Predicated region
      $region13: #{tpu_custom_call.1} parent=5 // pred_check
        %p125 = pneg %p124
      $region14: #{tpu_custom_call.1} parent=5 // pred_check_branch
        %127 = sbr.rel (%p125) target = $region16
      $region15: #{tpu_custom_call.1} parent=5 // pred_region
        // Predicated region
        $region17: #{tpu_custom_call.1} parent=15 // pred_check
          %p128 = pneg %p47
        $region18: #{tpu_custom_call.1} parent=15 // pred_check_branch
          %130 = sbr.rel (%p128) target = $region20
        $region19: #{tpu_custom_call.1} parent=15 // pred_region
          %s131 = smul.u32 %s18, 2
          %s132 = sadd.s32 %s131, %s19
          %s133 = smul.u32 2, %s132
          %p134 = scmp.lt.s32.totalorder %s133, 7
          %s135 = scalar_select %p134, %s133, 7
          %s136 = smul.addr %s135, 2
          %s137 = scalar_lea.vmem %s0, %s136
          %s138 = smul.u32 %s18, 2
          %s139 = sadd.s32 %s138, %s19
          %s140 = smul.u32 2, %s139
        $region20: #{tpu_custom_call.1} parent=15 // pred_fallthru
          _
        // Predicated region
        $region21: #{tpu_custom_call.1} parent=15 // pred_check
          %p141 = pneg %p77
        $region22: #{tpu_custom_call.1} parent=15 // pred_check_branch
          %143 = sbr.rel (%p141) target = $region24
        $region23: #{tpu_custom_call.1} parent=15 // pred_region
          %s144 = smul.u32 %s18, 2
          %s145 = sadd.s32 %s144, %s19
          %s146 = smul.u32 32, %s145
          %p147 = scmp.lt.s32.totalorder %s146, 127
          %s148 = scalar_select %p147, %s146, 127
          %s149 = smul.addr %s148, 4
          %s150 = scalar_lea.vmem %s1, %s149
          %s151 = smul.u32 %s18, 2
          %s152 = sadd.s32 %s151, %s19
          %s153 = smul.u32 32, %s152
        $region24: #{tpu_custom_call.1} parent=15 // pred_fallthru
          _
      $region16: #{tpu_custom_call.1} parent=5 // pred_fallthru
        _
      %p154 = scmp.le.s32.totalorder 1, %s11
      %p155 = scmp.lt.s32.totalorder %s11, 5
      %p156 = pnand %p154, %p155
      %p157 = pneg %p156
      // Predicated region
      $region25: #{tpu_custom_call.1} parent=5 // pred_check
        _
      $region26: #{tpu_custom_call.1} parent=5 // pred_check_branch
        %159 = sbr.rel (%p156) target = $region28
      $region27: #{tpu_custom_call.1} parent=5 // pred_region
        %s160 = ssub.s32 %s11, 1
        %s161 = smul.u32 %s20, 2
        %s162 = sadd.s32 %s161, %s21
        %s163 = smul.u32 2, %s162
        %p164 = scmp.lt.s32.totalorder %s163, 7
        %s165 = scalar_select %p164, %s163, 7
        %s166 = smul.addr %s165, 2
        %s167 = scalar_lea.vmem %s0, %s166
        %p168 = pneg %p53
        %p169 = pneg %p50
        %s170 = smul.u32 %s20, 2
        %s171 = sadd.s32 %s170, %s21
        %s172 = smul.u32 32, %s171
        %p173 = scmp.lt.s32.totalorder %s172, 127
        %s174 = scalar_select %p173, %s172, 127
        %s175 = smul.addr %s174, 4
        %s176 = scalar_lea.vmem %s1, %s175
        %p177 = pneg %p83
        %p178 = pneg %p80
        %p179 = pneg %p109
        %p180 = pneg %p106
        %s181 = sand.u32 %s96, 1
        %s182 = scalar_lea.sflag [#allocation3], %s181
        %s183 = sand.u32 %s96, 1
        %s184 = smul.addr %s183, 2
        %s185 = scalar_lea.vmem [#allocation2], %s184
        %s186 = smul.u32 %s20, 2
        %s187 = sadd.s32 %s186, %s21
        %s188 = smul.u32 2, %s187
        %p189 = scmp.lt.s32.totalorder %s188, 7
        %s190 = scalar_select %p189, %s188, 7
        %s191 = smul.addr %s190, 2
        %s192 = scalar_lea.vmem %s0, %s191
        %s193 = smul.u32 %s20, 2
        %s194 = sadd.s32 %s193, %s21
        %s195 = smul.u32 2, %s194
        %s196 = smul.u32 %s20, 2
        %s197 = sadd.s32 %s196, %s21
        %s198 = smul.u32 32, %s197
        %p199 = scmp.lt.s32.totalorder %s198, 127
        %s200 = scalar_select %p199, %s198, 127
        %s201 = smul.addr %s200, 4
        %s202 = scalar_lea.vmem %s1, %s201
        %s203 = smul.u32 %s20, 2
        %s204 = sadd.s32 %s203, %s21
        %s205 = smul.u32 32, %s204
        %p206 = scmp.eq.s32.totalorder %s21, 0
        // Predicated region
        $region29: #{tpu_custom_call.1} parent=27 // pred_check
          %p207 = pneg %p206
        $region30: #{tpu_custom_call.1} parent=27 // pred_check_branch
          %209 = sbr.rel (%p207) target = $region32
        $region31: #{tpu_custom_call.1} parent=27 // pred_region
          %vm210 = vcmask 517120
          %211 = vst.msk [vmem:[%s185] sm:$0x3] %vm210, 0.0
        $region32: #{tpu_custom_call.1} parent=27 // pred_fallthru
          _
        %v212 = vld [vmem:[%s192] sm:$0xf]
        %214 = vst [vmem:[#allocation1] ss:$4 sm:$0xff] %v212
        %v215 = vld.sshfl [vmem:[#allocation1] sm:$0xff pattern:$0x73625140]
        %v216 = vld.sshfl [vmem:[#allocation1 + $0x8] sm:$0xff pattern:$0x73625140]
        %vm219 = vcmask 1041408
        %v220 = vsel %vm219, %v215, 0.0
        %v221 = vrot.slane %v220, 4
        %v222 = vadd.f32 %v220, %v221
        %v223 = vrot.slane %v222, 2
        %v224 = vadd.f32 %v222, %v223
        %v225 = vrot.slane %v224, 1
        %v226 = vadd.f32 %v224, %v225
        %v227 = vsel %vm219, %v216, 0.0
        %v228 = vrot.slane %v227, 4
        %v229 = vadd.f32 %v227, %v228
        %v230 = vrot.slane %v229, 2
        %v231 = vadd.f32 %v229, %v230
        %v232 = vrot.slane %v231, 1
        %v233 = vadd.f32 %v231, %v232
        %v234 = vrcp.pop 2.0
        %v235 = vmul.f32 2.0, %v234
        %v236 = vsub.f32 1.0, %v235
        %v237 = vmul.f32 %v234, %v236
        %v238 = vadd.f32 %v234, %v237
        %vm239 = vweird.f32 %v234
        %v240 = vsel %vm239, %v234, %v238
        %v241 = vmul.f32 %v226, %v240
        %v242 = vmul.f32 %v233, %v240
        %v245 = vrot.slane %v242, 6
        %v246 = vsel %vm219, %v241, %v245
        %v248 = vsub.f32 %v212, %v246
        %v249 = vmul.f32 %v248, %v248
        %251 = vst [vmem:[#allocation1] ss:$4 sm:$0xff] %v249
        %v252 = vld.sshfl [vmem:[#allocation1] sm:$0xff pattern:$0x73625140]
        %v253 = vld.sshfl [vmem:[#allocation1 + $0x8] sm:$0xff pattern:$0x73625140]
        %v256 = vsel %vm219, %v252, 0.0
        %v257 = vrot.slane %v256, 4
        %v258 = vadd.f32 %v256, %v257
        %v259 = vrot.slane %v258, 2
        %v260 = vadd.f32 %v258, %v259
        %v261 = vrot.slane %v260, 1
        %v262 = vadd.f32 %v260, %v261
        %v263 = vsel %vm219, %v253, 0.0
        %v264 = vrot.slane %v263, 4
        %v265 = vadd.f32 %v263, %v264
        %v266 = vrot.slane %v265, 2
        %v267 = vadd.f32 %v265, %v266
        %v268 = vrot.slane %v267, 1
        %v269 = vadd.f32 %v267, %v268
        %v270 = vmul.f32 %v262, %v240
        %v271 = vmul.f32 %v269, %v240
        %v272 = vadd.f32 %v270, 1e-05
        %v273 = vadd.f32 %v271, 1e-05
        %v274 = vrsqrt.pop %v272
        %v275 = vmul.f32 %v274, %v272
        %v276 = vmul.f32 %v275, %v274
        %v277 = vmul.f32 0.5, %v276
        %v278 = vsub.f32 1.5, %v277
        %v279 = vmul.f32 %v274, %v278
        %vm280 = vweird.f32 %v272
        %vm281 = vweird.f32 %v274
        %vm282 = vmor %vm280, %vm281
        %v283 = vsel %vm282, %v274, %v279
        %v284 = vrsqrt.pop %v273
        %v285 = vmul.f32 %v284, %v273
        %v286 = vmul.f32 %v285, %v284
        %v287 = vmul.f32 0.5, %v286
        %v288 = vsub.f32 1.5, %v287
        %v289 = vmul.f32 %v284, %v288
        %vm290 = vweird.f32 %v273
        %vm291 = vweird.f32 %v284
        %vm292 = vmor %vm290, %vm291
        %v293 = vsel %vm292, %v284, %v289
        %v296 = vrot.slane %v293, 6
        %v297 = vsel %vm219, %v283, %v296
        %v299 = vmul.f32 %v248, %v297
        %v300 = vld [vmem:[%s185] sm:$0x3]
        %302 = vst [vmem:[#allocation1] ss:$4 sm:$0xff] %v299
        %v303 = vld.sshfl [vmem:[#allocation1] sm:$0xff pattern:$0x73625140]
        %v304 = vld.sshfl [vmem:[#allocation1 + $0x8] sm:$0xff pattern:$0x73625140]
        %v307 = vpack.c.bf16 %v303, %v303
        %v308 = vpack.c.bf16 %v304, %v304
        %v309 = vld [vmem:[%s202] sm:$0xf]
        %v310 = vld [vmem:[%s202 + $0x4] sm:$0xf]
        %v311 = vld [vmem:[%s202 + $0x8] sm:$0xf]
        %v312 = vld [vmem:[%s202 + $0xc] sm:$0xf]
        %v313 = vld [vmem:[%s202 + $0x10] sm:$0xf]
        %v314 = vld [vmem:[%s202 + $0x14] sm:$0xf]
        %v315 = vld [vmem:[%s202 + $0x18] sm:$0xf]
        %v316 = vld [vmem:[%s202 + $0x1c] sm:$0xf]
        %v317 = vld [vmem:[%s202 + $0x20] sm:$0xf]
        %v318 = vld [vmem:[%s202 + $0x24] sm:$0xf]
        %v319 = vld [vmem:[%s202 + $0x28] sm:$0xf]
        %v320 = vld [vmem:[%s202 + $0x2c] sm:$0xf]
        %v321 = vld [vmem:[%s202 + $0x30] sm:$0xf]
        %v322 = vld [vmem:[%s202 + $0x34] sm:$0xf]
        %v323 = vld [vmem:[%s202 + $0x38] sm:$0xf]
        %v324 = vld [vmem:[%s202 + $0x3c] sm:$0xf]
        %v325 = vld [vmem:[%s202 + $0x40] sm:$0xf]
        %v326 = vld [vmem:[%s202 + $0x44] sm:$0xf]
        %v327 = vld [vmem:[%s202 + $0x48] sm:$0xf]
        %v328 = vld [vmem:[%s202 + $0x4c] sm:$0xf]
        %v329 = vld [vmem:[%s202 + $0x50] sm:$0xf]
        %v330 = vld [vmem:[%s202 + $0x54] sm:$0xf]
        %v331 = vld [vmem:[%s202 + $0x58] sm:$0xf]
        %v332 = vld [vmem:[%s202 + $0x5c] sm:$0xf]
        %v333 = vld [vmem:[%s202 + $0x60] sm:$0xf]
        %v334 = vld [vmem:[%s202 + $0x64] sm:$0xf]
        %v335 = vld [vmem:[%s202 + $0x68] sm:$0xf]
        %v336 = vld [vmem:[%s202 + $0x6c] sm:$0xf]
        %v337 = vld [vmem:[%s202 + $0x70] sm:$0xf]
        %v338 = vld [vmem:[%s202 + $0x74] sm:$0xf]
        %v339 = vld [vmem:[%s202 + $0x78] sm:$0xf]
        %v340 = vld [vmem:[%s202 + $0x7c] sm:$0xf]
        %v373 = vunpack.c.l.b16 %v309
        %v374 = vunpack.c.l.b16 %v310
        %v375 = vunpack.c.l.b16 %v311
        %v376 = vunpack.c.l.b16 %v312
        %v377 = vunpack.c.l.b16 %v313
        %v378 = vunpack.c.l.b16 %v314
        %v379 = vunpack.c.l.b16 %v315
        %v380 = vunpack.c.l.b16 %v316
        %v381 = vunpack.c.l.b16 %v317
        %v382 = vunpack.c.l.b16 %v318
        %v383 = vunpack.c.l.b16 %v319
        %v384 = vunpack.c.l.b16 %v320
        %v385 = vunpack.c.l.b16 %v321
        %v386 = vunpack.c.l.b16 %v322
        %v387 = vunpack.c.l.b16 %v323
        %v388 = vunpack.c.l.b16 %v324
        %v389 = vunpack.c.l.b16 %v325
        %v390 = vunpack.c.l.b16 %v326
        %v391 = vunpack.c.l.b16 %v327
        %v392 = vunpack.c.l.b16 %v328
        %v393 = vunpack.c.l.b16 %v329
        %v394 = vunpack.c.l.b16 %v330
        %v395 = vunpack.c.l.b16 %v331
        %v396 = vunpack.c.l.b16 %v332
        %v397 = vunpack.c.l.b16 %v333
        %v398 = vunpack.c.l.b16 %v334
        %v399 = vunpack.c.l.b16 %v335
        %v400 = vunpack.c.l.b16 %v336
        %v401 = vunpack.c.l.b16 %v337
        %v402 = vunpack.c.l.b16 %v338
        %v403 = vunpack.c.l.b16 %v339
        %v404 = vunpack.c.l.b16 %v340
        %v405 = vpack.c.b16 %v374, %v373
        %v406 = vpack.c.b16 %v376, %v375
        %v407 = vpack.c.b16 %v378, %v377
        %v408 = vpack.c.b16 %v380, %v379
        %v409 = vpack.c.b16 %v382, %v381
        %v410 = vpack.c.b16 %v384, %v383
        %v411 = vpack.c.b16 %v386, %v385
        %v412 = vpack.c.b16 %v388, %v387
        %v413 = vpack.c.b16 %v390, %v389
        %v414 = vpack.c.b16 %v392, %v391
        %v415 = vpack.c.b16 %v394, %v393
        %v416 = vpack.c.b16 %v396, %v395
        %v417 = vpack.c.b16 %v398, %v397
        %v418 = vpack.c.b16 %v400, %v399
        %v419 = vpack.c.b16 %v402, %v401
        %v420 = vpack.c.b16 %v404, %v403
        %437 = vmatpush.bf16.msra.mxu0 %v412
        %438 = vmatpush.bf16.msra.mxu0 %v411
        %439 = vmatpush.bf16.msra.mxu0 %v410
        %440 = vmatpush.bf16.msra.mxu0 %v409
        %441 = vmatpush.bf16.msra.mxu0 %v408
        %442 = vmatpush.bf16.msra.mxu0 %v407
        %443 = vmatpush.bf16.msra.mxu0 %v406
        %444 = vmatpush.bf16.msra.mxu0 %v405
        %445 = vmatmul.bf16.gmra.mxu0 %v307
        %v446 = vpop.f32.mrf.mxu0
        %v447 = vadd.f32 0.0, %v446
        %v448 = vpop.f32.mrf.mxu0
        %449 = vdwg.mxu0
        %450 = vmatpush.bf16.msra.mxu0 %v420
        %451 = vmatpush.bf16.msra.mxu0 %v419
        %452 = vmatpush.bf16.msra.mxu0 %v418
        %453 = vmatpush.bf16.msra.mxu0 %v417
        %454 = vmatpush.bf16.msra.mxu0 %v416
        %455 = vmatpush.bf16.msra.mxu0 %v415
        %456 = vmatpush.bf16.msra.mxu0 %v414
        %457 = vmatpush.bf16.msra.mxu0 %v413
        %458 = vmatmul.bf16.gmra.mxu0 %v308
        %v459 = vpop.f32.mrf.mxu0
        %v460 = vadd.f32 %v447, %v459
        %v461 = vpop.f32.mrf.mxu0
        %462 = vdwg.mxu0
        %v463 = vadd.f32 %v300, %v460
        %vm464 = vcmask 517120
        %465 = vst.msk [vmem:[%s185] sm:$0x3] %vm464, %v463
        %s466 = sand.u32 %s96, 1
        %s467 = scalar_lea.sflag [#allocation3], %s466
        %s468 = sand.u32 %s96, 1
        %s469 = smul.addr %s468, 2
        %s470 = scalar_lea.vmem [#allocation2], %s469
        // Predicated region
        $region33: #{tpu_custom_call.1} parent=27 // pred_check
          %p471 = pneg %p106
        $region34: #{tpu_custom_call.1} parent=27 // pred_check_branch
          %473 = sbr.rel (%p471) target = $region36
        $region35: #{tpu_custom_call.1} parent=27 // pred_region
          %475 = vsyncadd %s467, 0
          %s476 = smul.addr %s20, 2
          %s477 = scalar_lea.hbm %s2, %s476
          %s479 = sshll.u32 %s470, 4
          %s480 = int_to_ptr.vmem [resolvable:$true] %s479
          %s481 = sshll.u32 %s477, 4
          %s482 = int_to_ptr.hbm [resolvable:$true] %s481
          %484 = dma.vmem_to_hbm [thread:$0]  %s480, 32, %s482, %s467
        $region36: #{tpu_custom_call.1} parent=27 // pred_fallthru
          _
      $region28: #{tpu_custom_call.1} parent=5 // pred_fallthru
        _
      %p485 = scmp.le.s32.totalorder 2, %s11
      // Predicated region
      $region37: #{tpu_custom_call.1} parent=5 // pred_check
        %p486 = pneg %p485
      $region38: #{tpu_custom_call.1} parent=5 // pred_check_branch
        %488 = sbr.rel (%p486) target = $region40
      $region39: #{tpu_custom_call.1} parent=5 // pred_region
        %s489 = ssub.s32 %s11, 2
        // Predicated region
        $region41: #{tpu_custom_call.1} parent=39 // pred_check
          %p490 = pneg %p112
        $region42: #{tpu_custom_call.1} parent=39 // pred_check_branch
          %492 = sbr.rel (%p490) target = $region44
        $region43: #{tpu_custom_call.1} parent=39 // pred_region
          %s493 = sand.u32 %s97, 1
          %s494 = scalar_lea.sflag [#allocation3], %s493
          %s495 = sand.u32 %s97, 1
          %s496 = smul.addr %s495, 2
          %s497 = scalar_lea.vmem [#allocation2], %s496
          %499 = dma.done %s494, 32
        $region44: #{tpu_custom_call.1} parent=39 // pred_fallthru
          _
      $region40: #{tpu_custom_call.1} parent=5 // pred_fallthru
        _
    $region6: #{tpu_custom_call.1} parent=1 // loop_footer
      %s15 = sadd.s32 1, %s11
    $region7: #{tpu_custom_call.1} parent=1 // loop_footer_branch
      %10 = sbr.rel target = $region3
    $region8: #{tpu_custom_call.1} parent=1 // loop_exit
      _
    %500 = vsyncpa [#allocation3], 1
    %s501 = scalar_lea.sflag [#allocation3], 1
    %502 = vsyncpa %s501, 1

</llo_original>
